<compile_context>
chip_gen: v7x
topology: tpu7x:2x2x1
jax: 0.10.0
libtpu: 0.0.40
codegen_flags: <defaults>
</compile_context>

<pallas_src>
import functools

import jax
import jax.numpy as jnp
from jax.experimental import pallas as pl
from jax.experimental.pallas import tpu as pltpu

# ----- synthetic config (mirrors the `args` dict of TextCNN) -----
ARGS = dict(
    label=5,
    num=8,                    # filter_num
    filter_sizes=(2, 3, 4),
    vocab_size=50,
    embedding_dim=32,
    seq_len=16,
)


def make_textcnn_kernel(tb, seq_len, filter_sizes, filter_num):
    """Kernel over one batch tile of `tb` sequences."""

    def kernel(emb_ref, wcat_ref, bcat_ref, wl_ref, bl_ref, out_ref):
        # emb_ref: (tb*L, C)  flattened batch tile
        # wcat_ref: (C, Npad) all conv taps of all widths, lane-padded to 128
        # bcat_ref: (1, F*K)  concatenated conv biases
        # wl_ref:   (F*K, label), bl_ref: (1, label)
        # One MXU push covers every filter width, every tap and the whole tile.
        y = jnp.dot(emb_ref[...], wcat_ref[...],
                    preferred_element_type=jnp.float32)       # (tb*L, Npad)
        y = y.reshape(tb, seq_len, -1)                         # (tb, L, Npad)

        pooled = []
        col = 0
        for s in filter_sizes:
            T = seq_len - s + 1
            # Conv1d(width s) = sum of s shifted slices of the fused matmul.
            acc = y[:, 0:T, col:col + filter_num]
            for k in range(1, s):
                acc = acc + y[:, k:k + T,
                              col + k * filter_num:col + (k + 1) * filter_num]
            pooled.append(jnp.max(acc, axis=1))                # (tb, F)
            col += s * filter_num

        feat = jnp.concatenate(pooled, axis=1)                 # (tb, F*K)
        # Conv bias + ReLU commute with max-over-time; the module's extra
        # post-concat ReLU is a provable no-op and is absorbed here.
        feat = jnp.maximum(feat + bcat_ref[...], 0.0)

        logits = jnp.dot(feat, wl_ref[...],
                         preferred_element_type=jnp.float32) + bl_ref[...]
        # LogSoftmax over the class axis.
        m = jnp.max(logits, axis=1, keepdims=True)
        z = logits - m
        out_ref[...] = z - jnp.log(jnp.sum(jnp.exp(z), axis=1, keepdims=True))

    return kernel


@functools.partial(jax.jit, static_argnames=("filter_sizes", "filter_num",
                                             "label", "seq_len"))
def _textcnn_pallas(emb_flat, wcat, bcat, wl, bl, *, filter_sizes, filter_num,
                    label, seq_len):
    BL, C = emb_flat.shape
    B = BL // seq_len
    K = len(filter_sizes)
    n_pad = wcat.shape[1]

    # Batch tile: whole batch at small B, multiple-of-8 tile when scaling.
    # (Re-derive smaller on v7x: 64 MiB physical / 32 MiB scoped VMEM.)
    TB = B if B <= 128 else 128
    grid = (pl.cdiv(B, TB),)

    kernel = make_textcnn_kernel(TB, seq_len, filter_sizes, filter_num)

    return pl.pallas_call(
        kernel,
        out_shape=jax.ShapeDtypeStruct((B, label), jnp.float32),
        grid_spec=pltpu.PrefetchScalarGridSpec(
            num_scalar_prefetch=0,
            grid=grid,
            in_specs=[
                pl.BlockSpec((TB * seq_len, C), lambda i: (i, 0)),     # emb tile
                pl.BlockSpec((C, n_pad), lambda i: (0, 0)),            # W_cat
                pl.BlockSpec((1, filter_num * K), lambda i: (0, 0)),   # conv bias
                pl.BlockSpec((filter_num * K, label), lambda i: (0, 0)),
                pl.BlockSpec((1, label), lambda i: (0, 0)),
            ],
            out_specs=pl.BlockSpec((TB, label), lambda i: (i, 0)),
        ),
        compiler_params=pltpu.CompilerParams(
            dimension_semantics=("parallel",)),                # megacore on v7x
    )(emb_flat, wcat, bcat, wl, bl)


def textcnn_forward(tokens, params, cfg):
    B, L = tokens.shape
    C = cfg['embedding_dim']
    F = cfg['num']
    sizes = tuple(cfg['filter_sizes'])
    K = len(sizes)
    label = cfg['label']

    # Embedding lookup (gather) is glue; stays in plain JAX.
    emb = params['embedding'][tokens].astype(jnp.float32)       # (B, L, C)
    emb_flat = emb.reshape(B * L, C)                            # free XLA reshape

    # Fuse every tap of every filter width into one weight, lane-padded to 128.
    wcat = jnp.concatenate(
        [params['conv_w'][i][k] for i, s in enumerate(sizes) for k in range(s)],
        axis=1)                                                 # (C, sum(s)*F)
    n = wcat.shape[1]
    n_pad = ((n + 127) // 128) * 128
    wcat = jnp.pad(wcat, ((0, 0), (0, n_pad - n)))

    bcat = jnp.concatenate([params['conv_b'][i] for i in range(K)],
                           axis=1)                              # (1, F*K)

    return _textcnn_pallas(emb_flat, wcat, bcat,
                           params['linear_w'], params['linear_b'],
                           filter_sizes=sizes, filter_num=F,
                           label=label, seq_len=L)


def textcnn_reference(tokens, params, cfg):
    """Pure-JAX reference (mirrors the PyTorch forward) for a sanity check."""
    emb = params['embedding'][tokens].astype(jnp.float32)       # (B, L, C)
    L = cfg['seq_len']
    feats = []
    for i, s in enumerate(cfg['filter_sizes']):
        w = params['conv_w'][i]                                 # (s, C, F)
        b = params['conv_b'][i]                                 # (1, F)
        T = L - s + 1
        acc = jnp.zeros((emb.shape[0], T, cfg['num']), jnp.float32)
        for k in range(s):
            acc = acc + jnp.einsum('btc,cf->btf', emb[:, k:k + T, :], w[k])
        acc = jnp.maximum(acc + b[None, :, :], 0.0)             # ReLU after bias
        feats.append(jnp.max(acc, axis=1))                      # max over time
    feat = jnp.maximum(jnp.concatenate(feats, axis=1), 0.0)     # self.relu
    logits = feat @ params['linear_w'] + params['linear_b']
    return jax.nn.log_softmax(logits, axis=1)


def init_params(key, cfg):
    C = cfg['embedding_dim']
    F = cfg['num']
    K = len(cfg['filter_sizes'])
    keys = jax.random.split(key, 4 + 2 * K)
    params = {
        'embedding': jax.random.normal(keys[0], (cfg['vocab_size'], C),
                                       jnp.float32) * 0.1,
        'conv_w': [],
        'conv_b': [],
        'linear_w': jax.random.normal(keys[1], (F * K, cfg['label']),
                                      jnp.float32) * 0.1,
        'linear_b': jax.random.normal(keys[2], (1, cfg['label']),
                                      jnp.float32) * 0.1,
    }
    for i, s in enumerate(cfg['filter_sizes']):
        params['conv_w'].append(
            jax.random.normal(keys[3 + 2 * i], (s, C, F), jnp.float32) * 0.1)
        params['conv_b'].append(
            jax.random.normal(keys[4 + 2 * i], (1, F), jnp.float32) * 0.1)
    return params


if __name__ == "__main__":
    cfg = ARGS
    key = jax.random.PRNGKey(0)
    pkey, tkey = jax.random.split(key)
    params = init_params(pkey, cfg)

    B = 2
    tokens = jax.random.randint(tkey, (B, cfg['seq_len']), 0,
                                cfg['vocab_size'], dtype=jnp.int32)

    out = textcnn_forward(tokens, params, cfg)
    out = jax.block_until_ready(out)

    ref = jax.block_until_ready(textcnn_reference(tokens, params, cfg))
    assert out.shape == (B, cfg['label'])
    assert jnp.allclose(out, ref, atol=1e-4, rtol=1e-4), "mismatch vs reference"

    print("KERNEL_OK")
</pallas_src>

<mosaic_0001>
module attributes {stable_mosaic.version = 11 : i64} {
  func.func @kernel(%arg0: i32, %arg1: memref<32x32xf32, #tpu.memory_space<vmem>>, %arg2: memref<32x128xf32, #tpu.memory_space<vmem>>, %arg3: memref<1x24xf32, #tpu.memory_space<vmem>>, %arg4: memref<24x5xf32, #tpu.memory_space<vmem>>, %arg5: memref<1x5xf32, #tpu.memory_space<vmem>>, %arg6: memref<2x5xf32, #tpu.memory_space<vmem>>) attributes {dimension_semantics = [#tpu.dimension_semantics<parallel>], iteration_bounds = array<i64: 1>, scalar_prefetch = 0 : i64, scratch_operands = 0 : i64, tpu.core_type = #tpu.core_type<tc>, window_params = [{transform_indices = @transform_0, window_bounds = array<i64: 32, 32>}, {pipeline_mode = #tpu.pipeline_mode<synchronous>, transform_indices = @transform_1, window_bounds = array<i64: 32, 128>}, {pipeline_mode = #tpu.pipeline_mode<synchronous>, transform_indices = @transform_2, window_bounds = array<i64: 1, 24>}, {pipeline_mode = #tpu.pipeline_mode<synchronous>, transform_indices = @transform_3, window_bounds = array<i64: 24, 5>}, {pipeline_mode = #tpu.pipeline_mode<synchronous>, transform_indices = @transform_4, window_bounds = array<i64: 1, 5>}, {transform_indices = @transform_5, window_bounds = array<i64: 2, 5>}]} {
    %c0 = arith.constant 0 : index
    %c0_0 = arith.constant 0 : index
    %0 = vector.load %arg1[%c0, %c0_0] : memref<32x32xf32, #tpu.memory_space<vmem>>, vector<32x32xf32>
    %c0_1 = arith.constant 0 : index
    %c0_2 = arith.constant 0 : index
    %1 = vector.load %arg2[%c0_1, %c0_2] : memref<32x128xf32, #tpu.memory_space<vmem>>, vector<32x128xf32>
    %cst = arith.constant dense<0.000000e+00> : vector<32x128xf32>
    %2 = tpu.matmul %0, %1, %cst {dimension_numbers = #tpu.dot_dimension_numbers<[1], [0], [0], [1], [0, 0, 1, 1], [], []>} : vector<32x32xf32>, vector<32x128xf32>, vector<32x128xf32> -> vector<32x128xf32>
    %3 = vector.shape_cast %2 : vector<32x128xf32> to vector<2x16x128xf32>
    %4 = vector.extract_strided_slice %3 {offsets = [0, 0, 0], sizes = [2, 15, 8], strides = [1, 1, 1]} : vector<2x16x128xf32> to vector<2x15x8xf32>
    %5 = vector.extract_strided_slice %3 {offsets = [0, 1, 8], sizes = [2, 15, 8], strides = [1, 1, 1]} : vector<2x16x128xf32> to vector<2x15x8xf32>
    %6 = arith.addf %4, %5 : vector<2x15x8xf32>
    %cst_3 = arith.constant dense<0xFF800000> : vector<2x8xf32>
    %7 = vector.multi_reduction <maximumf>, %6, %cst_3 [1] : vector<2x15x8xf32> to vector<2x8xf32>
    %8 = vector.extract_strided_slice %3 {offsets = [0, 0, 16], sizes = [2, 14, 8], strides = [1, 1, 1]} : vector<2x16x128xf32> to vector<2x14x8xf32>
    %9 = vector.extract_strided_slice %3 {offsets = [0, 1, 24], sizes = [2, 14, 8], strides = [1, 1, 1]} : vector<2x16x128xf32> to vector<2x14x8xf32>
    %10 = arith.addf %8, %9 : vector<2x14x8xf32>
    %11 = vector.extract_strided_slice %3 {offsets = [0, 2, 32], sizes = [2, 14, 8], strides = [1, 1, 1]} : vector<2x16x128xf32> to vector<2x14x8xf32>
    %12 = arith.addf %10, %11 : vector<2x14x8xf32>
    %cst_4 = arith.constant dense<0xFF800000> : vector<2x8xf32>
    %13 = vector.multi_reduction <maximumf>, %12, %cst_4 [1] : vector<2x14x8xf32> to vector<2x8xf32>
    %14 = vector.extract_strided_slice %3 {offsets = [0, 0, 40], sizes = [2, 13, 8], strides = [1, 1, 1]} : vector<2x16x128xf32> to vector<2x13x8xf32>
    %15 = vector.extract_strided_slice %3 {offsets = [0, 1, 48], sizes = [2, 13, 8], strides = [1, 1, 1]} : vector<2x16x128xf32> to vector<2x13x8xf32>
    %16 = arith.addf %14, %15 : vector<2x13x8xf32>
    %17 = vector.extract_strided_slice %3 {offsets = [0, 2, 56], sizes = [2, 13, 8], strides = [1, 1, 1]} : vector<2x16x128xf32> to vector<2x13x8xf32>
    %18 = arith.addf %16, %17 : vector<2x13x8xf32>
    %19 = vector.extract_strided_slice %3 {offsets = [0, 3, 64], sizes = [2, 13, 8], strides = [1, 1, 1]} : vector<2x16x128xf32> to vector<2x13x8xf32>
    %20 = arith.addf %18, %19 : vector<2x13x8xf32>
    %cst_5 = arith.constant dense<0xFF800000> : vector<2x8xf32>
    %21 = vector.multi_reduction <maximumf>, %20, %cst_5 [1] : vector<2x13x8xf32> to vector<2x8xf32>
    %22 = tpu.concatenate %7, %13, %21 in 1 : vector<2x8xf32>, vector<2x8xf32>, vector<2x8xf32> -> vector<2x24xf32>
    %c0_6 = arith.constant 0 : index
    %c0_7 = arith.constant 0 : index
    %23 = vector.load %arg3[%c0_6, %c0_7] : memref<1x24xf32, #tpu.memory_space<vmem>>, vector<1x24xf32>
    %24 = vector.broadcast %23 : vector<1x24xf32> to vector<2x24xf32>
    %25 = arith.addf %22, %24 : vector<2x24xf32>
    %cst_8 = arith.constant 0.000000e+00 : f32
    %26 = vector.broadcast %cst_8 : f32 to vector<2x24xf32>
    %27 = arith.maximumf %25, %26 : vector<2x24xf32>
    %c0_9 = arith.constant 0 : index
    %c0_10 = arith.constant 0 : index
    %28 = vector.load %arg4[%c0_9, %c0_10] : memref<24x5xf32, #tpu.memory_space<vmem>>, vector<24x5xf32>
    %cst_11 = arith.constant dense<0.000000e+00> : vector<2x5xf32>
    %29 = tpu.matmul %27, %28, %cst_11 {dimension_numbers = #tpu.dot_dimension_numbers<[1], [0], [0], [1], [0, 0, 1, 1], [], []>} : vector<2x24xf32>, vector<24x5xf32>, vector<2x5xf32> -> vector<2x5xf32>
    %c0_12 = arith.constant 0 : index
    %c0_13 = arith.constant 0 : index
    %30 = vector.load %arg5[%c0_12, %c0_13] : memref<1x5xf32, #tpu.memory_space<vmem>>, vector<1x5xf32>
    %31 = vector.broadcast %30 : vector<1x5xf32> to vector<2x5xf32>
    %32 = arith.addf %29, %31 : vector<2x5xf32>
    %cst_14 = arith.constant dense<0xFF800000> : vector<2xf32>
    %33 = vector.multi_reduction <maximumf>, %32, %cst_14 [1] : vector<2x5xf32> to vector<2xf32>
    %34 = vector.shape_cast %33 : vector<2xf32> to vector<2x1xf32>
    %35 = vector.broadcast %34 : vector<2x1xf32> to vector<2x5xf32>
    %36 = arith.subf %32, %35 : vector<2x5xf32>
    %37 = math.exp %36 : vector<2x5xf32>
    %cst_15 = arith.constant dense<0.000000e+00> : vector<2xf32>
    %38 = vector.multi_reduction <add>, %37, %cst_15 [1] : vector<2x5xf32> to vector<2xf32>
    %39 = vector.shape_cast %38 : vector<2xf32> to vector<2x1xf32>
    %40 = math.log %39 : vector<2x1xf32>
    %41 = vector.broadcast %40 : vector<2x1xf32> to vector<2x5xf32>
    %42 = arith.subf %36, %41 : vector<2x5xf32>
    %c0_16 = arith.constant 0 : index
    %c0_17 = arith.constant 0 : index
    %43 = vector.load %arg6[%c0_16, %c0_17] : memref<2x5xf32, #tpu.memory_space<vmem>>, vector<2x5xf32>
    tpu.vector_store %arg6[%c0_16, %c0_17], %42 {strides = array<i32>} : memref<2x5xf32, #tpu.memory_space<vmem>>, vector<2x5xf32>,
    return
  }
  func.func @transform_0(%arg0: i32) -> (i32, i32) {
    %c0_i32 = arith.constant 0 : i32
    %c0_i32_0 = arith.constant 0 : i32
    return %arg0, %c0_i32 : i32, i32
  }
  func.func @transform_1(%arg0: i32) -> (i32, i32) {
    %c0_i32 = arith.constant 0 : i32
    %c0_i32_0 = arith.constant 0 : i32
    %c0_i32_1 = arith.constant 0 : i32
    return %c0_i32, %c0_i32_0 : i32, i32
  }
  func.func @transform_2(%arg0: i32) -> (i32, i32) {
    %c0_i32 = arith.constant 0 : i32
    %c0_i32_0 = arith.constant 0 : i32
    %c0_i32_1 = arith.constant 0 : i32
    return %c0_i32, %c0_i32_0 : i32, i32
  }
  func.func @transform_3(%arg0: i32) -> (i32, i32) {
    %c0_i32 = arith.constant 0 : i32
    %c0_i32_0 = arith.constant 0 : i32
    %c0_i32_1 = arith.constant 0 : i32
    return %c0_i32, %c0_i32_0 : i32, i32
  }
  func.func @transform_4(%arg0: i32) -> (i32, i32) {
    %c0_i32 = arith.constant 0 : i32
    %c0_i32_0 = arith.constant 0 : i32
    %c0_i32_1 = arith.constant 0 : i32
    return %c0_i32, %c0_i32_0 : i32, i32
  }
  func.func @transform_5(%arg0: i32) -> (i32, i32) {
    %c0_i32 = arith.constant 0 : i32
    %c0_i32_0 = arith.constant 0 : i32
    return %arg0, %c0_i32 : i32, i32
  }
}

</mosaic_0001>

<llo_original>
// kernel: _textcnn_pallas.1
$region0: #{_textcnn_pallas.1}
  #allocation0 [shape = 'u32[]', space=smem, size = 0x4, offset = 0x4, fixed_abs, tag = 'smem constant byte address 0x4 - core index']
  #allocation1 [shape = 'u32[144,128]{1,0:T(1,128)}', space=vmem, size = 0x12000, scoped, tag = 'internal scratch']
  %s0 = inlined_call_operand.vmem [shape: f32[32,32], index: 0, kind: input, shape index: {}]
  %s1 = inlined_call_operand.hbm [shape: f32[32,128], index: 1, kind: input, shape index: {}]
  %s2 = inlined_call_operand.vmem [shape: f32[1,24], index: 2, kind: input, shape index: {}]
  %s3 = inlined_call_operand.vmem [shape: f32[24,5], index: 3, kind: input, shape index: {}]
  %s4 = inlined_call_operand.vmem [shape: f32[1,5], index: 4, kind: input, shape index: {}]
  %s5 = inlined_call_operand.hbm [shape: f32[2,5], index: 5, kind: output, shape index: {}]
  %s6 = sld [smem:[#allocation0]]
  $region34: #{_textcnn_pallas.1} parent=0
    _
  %s8 = ssub.s32 1, %s6
  %s9 = scalar_select 0, %s8, %s6
  $region1: #{_textcnn_pallas.1} parent=0
    #allocation2 [shape = 'u8[16384]{0}', space=vmem, size = 0x4000, scoped, tag = 'input window, operand 1, single buffered']
    #allocation3 [shape = 's32[1]{0}', space=sflag, size = 0x4, scoped, tag = 'scoped memory for _textcnn_pallas.1']
    #allocation4 [shape = 's32[1]{0}', space=sflag, size = 0x4, scoped, tag = 'scoped memory for _textcnn_pallas.1']
    #allocation5 [shape = 'u8[1024]{0}', space=vmem, size = 0x400, scoped, tag = 'output window, operand 0, single buffered']
    %10 = vsyncpa [#allocation3], 0
    %11 = vsyncpa [#allocation4], 0
    // Predicated region
    $region2: #{_textcnn_pallas.1} parent=1 // pred_check
      _
    $region3: #{_textcnn_pallas.1} parent=1 // pred_check_branch
      %13 = sbr.rel (0) target = $region5
    $region4: #{_textcnn_pallas.1} parent=1 // pred_region
      _
    $region5: #{_textcnn_pallas.1} parent=1 // pred_fallthru
      _
    // Predicated region
    $region6: #{_textcnn_pallas.1} parent=1 // pred_check
      _
    $region7: #{_textcnn_pallas.1} parent=1 // pred_check_branch
      %15 = sbr.rel (0) target = $region9
    $region8: #{_textcnn_pallas.1} parent=1 // pred_region
      %s17 = ssub.s32 512, 512
      %18 = vsyncadd [#allocation3], %s17
      %s19 = sshll.u32 [#allocation2], 4
      %s20 = int_to_ptr.vmem [resolvable:$true] %s19
      %25 = dma.hbm_to_vmem [thread:$0]  %s1, 512, %s20, [#allocation3], 128, 128, 8
    $region9: #{_textcnn_pallas.1} parent=1 // pred_fallthru
      _
    // Predicated region
    $region10: #{_textcnn_pallas.1} parent=1 // pred_check
      _
    $region11: #{_textcnn_pallas.1} parent=1 // pred_check_branch
      %27 = sbr.rel (0) target = $region13
    $region12: #{_textcnn_pallas.1} parent=1 // pred_region
      _
    $region13: #{_textcnn_pallas.1} parent=1 // pred_fallthru
      _
    // Predicated region
    $region14: #{_textcnn_pallas.1} parent=1 // pred_check
      _
    $region15: #{_textcnn_pallas.1} parent=1 // pred_check_branch
      %29 = sbr.rel (0) target = $region17
    $region16: #{_textcnn_pallas.1} parent=1 // pred_region
      _
    $region17: #{_textcnn_pallas.1} parent=1 // pred_fallthru
      _
    // Predicated region
    $region18: #{_textcnn_pallas.1} parent=1 // pred_check
      _
    $region19: #{_textcnn_pallas.1} parent=1 // pred_check_branch
      %31 = sbr.rel (0) target = $region21
    $region20: #{_textcnn_pallas.1} parent=1 // pred_region
      _
    $region21: #{_textcnn_pallas.1} parent=1 // pred_fallthru
      _
    // Predicated region
    $region22: #{_textcnn_pallas.1} parent=1 // pred_check
      _
    $region23: #{_textcnn_pallas.1} parent=1 // pred_check_branch
      %33 = sbr.rel (0) target = $region25
    $region24: #{_textcnn_pallas.1} parent=1 // pred_region
      %34 = dma.done [#allocation3], 512
    $region25: #{_textcnn_pallas.1} parent=1 // pred_fallthru
      _
    %v35 = vld [vmem:[%s0] sm:$0xff]
    %v36 = vld [vmem:[%s0 + $0x8] sm:$0xff]
    %v37 = vld [vmem:[%s0 + $0x10] sm:$0xff]
    %v38 = vld [vmem:[%s0 + $0x18] sm:$0xff]
    %v39 = vld [vmem:[#allocation2] sm:$0xff]
    %v40 = vld [vmem:[#allocation2 + $0x8] sm:$0xff]
    %v41 = vld [vmem:[#allocation2 + $0x10] sm:$0xff]
    %v42 = vld [vmem:[#allocation2 + $0x18] sm:$0xff]
    %vm43 = vcmask 261120
    %v45 = vsel %vm43, %v35, 0
    %v48 = vsel %vm43, %v36, 0
    %v51 = vsel %vm43, %v37, 0
    %v54 = vsel %vm43, %v38, 0
    %56 = vmatprep.subr.mxu0 0.0
    %57 = vmatpush1.msra.mxu0 %v39
    %58 = vmatprep.subr.mxu0 0.0
    %59 = vmatpush1.msra.mxu0 %v40
    %60 = vmatprep.subr.mxu0 0.0
    %61 = vmatpush1.msra.mxu0 %v41
    %62 = vmatprep.subr.mxu0 0.0
    %63 = vmatpush1.msra.mxu0 %v42
    %64 = vmatprep.subr.mxu0 0.0
    %65 = vmatpush1.msra.mxu0 0.0
    %66 = vmatprep.subr.mxu0 0.0
    %67 = vmatpush1.msra.mxu0 0.0
    %68 = vmatprep.subr.mxu0 0.0
    %69 = vmatpush1.msra.mxu0 0.0
    %70 = vmatprep.subr.mxu0 0.0
    %71 = vmatpush1.msra.mxu0 0.0
    %72 = vmatprep.subr.mxu0 0.0
    %73 = vmatpush1.msra.mxu0 0.0
    %74 = vmatprep.subr.mxu0 0.0
    %75 = vmatpush1.msra.mxu0 0.0
    %76 = vmatprep.subr.mxu0 0.0
    %77 = vmatpush1.msra.mxu0 0.0
    %78 = vmatprep.subr.mxu0 0.0
    %79 = vmatpush1.msra.mxu0 0.0
    %80 = vmatprep.subr.mxu0 0.0
    %81 = vmatpush1.msra.mxu0 0.0
    %82 = vmatprep.subr.mxu0 0.0
    %83 = vmatpush1.msra.mxu0 0.0
    %84 = vmatprep.subr.mxu0 0.0
    %85 = vmatpush1.msra.mxu0 0.0
    %86 = vmatprep.subr.mxu0 0.0
    %87 = vmatpush1.msra.mxu0 0.0
    %88 = vmatprep.subr.mxu0 0.0
    %89 = vmatpush1.msra.mxu0 0.0
    %90 = vmatprep.subr.mxu0 0.0
    %91 = vmatpush1.msra.mxu0 0.0
    %92 = vmatprep.subr.mxu0 0.0
    %93 = vmatpush1.msra.mxu0 0.0
    %94 = vmatprep.subr.mxu0 0.0
    %95 = vmatpush1.msra.mxu0 0.0
    %96 = vmatprep.subr.mxu0 0.0
    %97 = vmatpush1.msra.mxu0 0.0
    %98 = vmatprep.subr.mxu0 0.0
    %99 = vmatpush1.msra.mxu0 0.0
    %100 = vmatprep.subr.mxu0 0.0
    %101 = vmatpush1.msra.mxu0 0.0
    %102 = vmatprep.subr.mxu0 0.0
    %103 = vmatpush1.msra.mxu0 0.0
    %104 = vmatprep.subr.mxu0 0.0
    %105 = vmatpush1.msra.mxu0 0.0
    %106 = vmatprep.subr.mxu0 0.0
    %107 = vmatpush1.msra.mxu0 0.0
    %108 = vmatprep.subr.mxu0 0.0
    %109 = vmatpush1.msra.mxu0 0.0
    %110 = vmatprep.subr.mxu0 0.0
    %111 = vmatpush1.msra.mxu0 0.0
    %112 = vmatprep.subr.mxu0 0.0
    %113 = vmatpush1.msra.mxu0 0.0
    %114 = vmatprep.subr.mxu0 0.0
    %115 = vmatpush1.msra.mxu0 0.0
    %116 = vmatprep.subr.mxu0 0.0
    %117 = vmatpush1.msra.mxu0 0.0
    %118 = vmatprep.subr.mxu0 0.0
    %119 = vmatpush1.msra.mxu0 0.0
    %120 = vmatprep.mubr.f32.mxu0 0.0
    %121 = vmatmul.mubr.f32.gmra.mrb[0].mxu0 %v45
    %v122 = vpop.f32.mrb[0].mxu0
    %v123 = vadd.f32 0.0, %v122
    %v124 = vpop.f32.mrb[0].mxu0
    %125 = vmatprep.mubr.f32.mxu0 0.0
    %126 = vmatmul.mubr.f32.gmra.mrb[0].mxu0 %v48
    %v127 = vpop.f32.mrb[0].mxu0
    %v128 = vadd.f32 0.0, %v127
    %v129 = vpop.f32.mrb[0].mxu0
    %130 = vmatprep.mubr.f32.mxu0 0.0
    %131 = vmatmul.mubr.f32.gmra.mrb[0].mxu0 %v51
    %v132 = vpop.f32.mrb[0].mxu0
    %v133 = vadd.f32 0.0, %v132
    %v134 = vpop.f32.mrb[0].mxu0
    %135 = vmatprep.mubr.f32.mxu0 0.0
    %136 = vmatmul.mubr.f32.gmra.mrb[0].mxu0 %v54
    %v137 = vpop.f32.mrb[0].mxu0
    %v138 = vadd.f32 0.0, %v137
    %v139 = vpop.f32.mrb[0].mxu0
    %140 = vdwg.mxu0
    %vm145 = vcmask 1046528
    %v146 = vrot.slane %v123, 1
    %v147 = vrot.slane %v128, 1
    %v148 = vsel %vm145, %v146, %v147
    %v149 = vrot.slane %v133, 1
    %v150 = vrot.slane %v138, 1
    %v151 = vsel %vm145, %v149, %v150
    %152 = vrot.lane.b32.xlu0 %v148, 120
    %v153 = vpop.permute.xlu0 %152
    %154 = vrot.lane.b32.xlu0 %v147, 120
    %v155 = vpop.permute.xlu0 %154
    %156 = vrot.lane.b32.xlu0 %v151, 120
    %v157 = vpop.permute.xlu0 %156
    %158 = vrot.lane.b32.xlu0 %v150, 120
    %v159 = vpop.permute.xlu0 %158
    %v164 = vadd.f32 %v123, %v153
    %v165 = vadd.f32 %v128, %v155
    %v166 = vadd.f32 %v133, %v157
    %v167 = vadd.f32 %v138, %v159
    %vm168 = vcmask 64512
    %v169 = vsel %vm168, %v164, -inf
    %vm170 = vcmask 63488
    %v171 = vsel %vm170, %v165, -inf
    %v172 = vmax.f32 %v169, %v171
    %v173 = vrot.slane %v172, 4
    %v174 = vmax.f32 %v172, %v173
    %v175 = vrot.slane %v174, 2
    %v176 = vmax.f32 %v174, %v175
    %v177 = vrot.slane %v176, 1
    %v178 = vmax.f32 %v176, %v177
    %v179 = vsel %vm168, %v166, -inf
    %v180 = vsel %vm170, %v167, -inf
    %v181 = vmax.f32 %v179, %v180
    %v182 = vrot.slane %v181, 4
    %v183 = vmax.f32 %v181, %v182
    %v184 = vrot.slane %v183, 2
    %v185 = vmax.f32 %v183, %v184
    %v186 = vrot.slane %v185, 1
    %v187 = vmax.f32 %v185, %v186
    %vm188 = vcmask 1045504
    %v189 = vrot.slane %v123, 2
    %v190 = vrot.slane %v128, 2
    %v191 = vsel %vm188, %v189, %v190
    %v192 = vrot.slane %v133, 2
    %v193 = vrot.slane %v138, 2
    %v194 = vsel %vm188, %v192, %v193
    %195 = vrot.lane.b32.xlu0 %v191, 112
    %v196 = vpop.permute.xlu0 %195
    %197 = vrot.lane.b32.xlu0 %v190, 112
    %v198 = vpop.permute.xlu0 %197
    %199 = vrot.lane.b32.xlu0 %v194, 112
    %v200 = vpop.permute.xlu0 %199
    %201 = vrot.lane.b32.xlu0 %v193, 112
    %v202 = vpop.permute.xlu0 %201
    %v207 = vadd.f32 %v164, %v196
    %v208 = vadd.f32 %v165, %v198
    %v209 = vadd.f32 %v166, %v200
    %v210 = vadd.f32 %v167, %v202
    %vm211 = vcmask 195712
    %v212 = vsel %vm211, %v207, -inf
    %vm213 = vcmask 193664
    %v214 = vsel %vm213, %v208, -inf
    %v215 = vmax.f32 %v212, %v214
    %v216 = vrot.slane %v215, 4
    %v217 = vmax.f32 %v215, %v216
    %v218 = vrot.slane %v217, 2
    %v219 = vmax.f32 %v217, %v218
    %v220 = vrot.slane %v219, 1
    %v221 = vmax.f32 %v219, %v220
    %v222 = vsel %vm211, %v209, -inf
    %v223 = vsel %vm213, %v210, -inf
    %v224 = vmax.f32 %v222, %v223
    %v225 = vrot.slane %v224, 4
    %v226 = vmax.f32 %v224, %v225
    %v227 = vrot.slane %v226, 2
    %v228 = vmax.f32 %v226, %v227
    %v229 = vrot.slane %v228, 1
    %v230 = vmax.f32 %v228, %v229
    %vm231 = vcmask 1044480
    %v232 = vrot.slane %v123, 3
    %v233 = vrot.slane %v128, 3
    %v234 = vsel %vm231, %v232, %v233
    %v235 = vrot.slane %v133, 3
    %v236 = vrot.slane %v138, 3
    %v237 = vsel %vm231, %v235, %v236
    %238 = vrot.lane.b32.xlu0 %v234, 104
    %v239 = vpop.permute.xlu0 %238
    %240 = vrot.lane.b32.xlu0 %v233, 104
    %v241 = vpop.permute.xlu0 %240
    %242 = vrot.lane.b32.xlu0 %v237, 104
    %v243 = vpop.permute.xlu0 %242
    %244 = vrot.lane.b32.xlu0 %v236, 104
    %v245 = vpop.permute.xlu0 %244
    %v250 = vadd.f32 %v207, %v239
    %v251 = vadd.f32 %v208, %v241
    %v252 = vadd.f32 %v209, %v243
    %v253 = vadd.f32 %v210, %v245
    %vm254 = vcmask 392512
    %v255 = vsel %vm254, %v250, -inf
    %vm256 = vcmask 389440
    %v257 = vsel %vm256, %v251, -inf
    %v258 = vmax.f32 %v255, %v257
    %v259 = vrot.slane %v258, 4
    %v260 = vmax.f32 %v258, %v259
    %v261 = vrot.slane %v260, 2
    %v262 = vmax.f32 %v260, %v261
    %v263 = vrot.slane %v262, 1
    %v264 = vmax.f32 %v262, %v263
    %v265 = vsel %vm254, %v252, -inf
    %v266 = vsel %vm256, %v253, -inf
    %v267 = vmax.f32 %v265, %v266
    %v268 = vrot.slane %v267, 4
    %v269 = vmax.f32 %v267, %v268
    %v270 = vrot.slane %v269, 2
    %v271 = vmax.f32 %v269, %v270
    %v272 = vrot.slane %v271, 1
    %v273 = vmax.f32 %v271, %v272
    %vm276 = vcmask 1041409
    %v277 = vsel %vm276, %v187, %v178
    %v281 = vsel %vm276, %v230, %v221
    %282 = vrot.lane.b32.xlu0 %v281, 120
    %v283 = vpop.permute.xlu0 %282
    %v287 = vsel %vm276, %v273, %v264
    %288 = vrot.lane.b32.xlu0 %v287, 104
    %v289 = vpop.permute.xlu0 %288
    %v291 = vsel %vm168, %v277, %v283
    %vm292 = vcmask 130048
    %v293 = vsel %vm292, %v291, %v289
    %v294 = vld [vmem:[%s2] sm:$0x1]
    %v296 = vlaneseq
    %v297 = vshrl.u32 %v296, 7
    %v298 = vsub.s32 0, %v297
    %v299 = vrot.slane %v294, %v298
    %v301 = vadd.f32 %v293, %v299
    %v302 = vmax.f32 %v301, 0.0
    %v303 = vld [vmem:[%s3] sm:$0xff]
    %v304 = vld [vmem:[%s3 + $0x8] sm:$0xff]
    %v305 = vld [vmem:[%s3 + $0x10] sm:$0xff]
    %v306 = vld [vmem:[%s4] sm:$0x1]
    %v308 = vlaneseq
    %v309 = vshrl.u32 %v308, 7
    %v310 = vsub.s32 0, %v309
    %v311 = vrot.slane %v306, %v310
    %vm313 = vcmask 195584
    %v315 = vsel %vm313, %v302, 0
    %317 = vmatprep.subr.mxu0 0.0
    %318 = vmatpush1.msra.mxu0 %v303
    %319 = vmatprep.subr.mxu0 0.0
    %320 = vmatpush1.msra.mxu0 %v304
    %321 = vmatprep.subr.mxu0 0.0
    %322 = vmatpush1.msra.mxu0 %v305
    %323 = vmatprep.subr.mxu0 0.0
    %324 = vmatpush1.msra.mxu0 0.0
    %325 = vmatprep.subr.mxu0 0.0
    %326 = vmatpush1.msra.mxu0 0.0
    %327 = vmatprep.subr.mxu0 0.0
    %328 = vmatpush1.msra.mxu0 0.0
    %329 = vmatprep.subr.mxu0 0.0
    %330 = vmatpush1.msra.mxu0 0.0
    %331 = vmatprep.subr.mxu0 0.0
    %332 = vmatpush1.msra.mxu0 0.0
    %333 = vmatprep.subr.mxu0 0.0
    %334 = vmatpush1.msra.mxu0 0.0
    %335 = vmatprep.subr.mxu0 0.0
    %336 = vmatpush1.msra.mxu0 0.0
    %337 = vmatprep.subr.mxu0 0.0
    %338 = vmatpush1.msra.mxu0 0.0
    %339 = vmatprep.subr.mxu0 0.0
    %340 = vmatpush1.msra.mxu0 0.0
    %341 = vmatprep.subr.mxu0 0.0
    %342 = vmatpush1.msra.mxu0 0.0
    %343 = vmatprep.subr.mxu0 0.0
    %344 = vmatpush1.msra.mxu0 0.0
    %345 = vmatprep.subr.mxu0 0.0
    %346 = vmatpush1.msra.mxu0 0.0
    %347 = vmatprep.subr.mxu0 0.0
    %348 = vmatpush1.msra.mxu0 0.0
    %349 = vmatprep.subr.mxu0 0.0
    %350 = vmatpush1.msra.mxu0 0.0
    %351 = vmatprep.subr.mxu0 0.0
    %352 = vmatpush1.msra.mxu0 0.0
    %353 = vmatprep.subr.mxu0 0.0
    %354 = vmatpush1.msra.mxu0 0.0
    %355 = vmatprep.subr.mxu0 0.0
    %356 = vmatpush1.msra.mxu0 0.0
    %357 = vmatprep.subr.mxu0 0.0
    %358 = vmatpush1.msra.mxu0 0.0
    %359 = vmatprep.subr.mxu0 0.0
    %360 = vmatpush1.msra.mxu0 0.0
    %361 = vmatprep.subr.mxu0 0.0
    %362 = vmatpush1.msra.mxu0 0.0
    %363 = vmatprep.subr.mxu0 0.0
    %364 = vmatpush1.msra.mxu0 0.0
    %365 = vmatprep.subr.mxu0 0.0
    %366 = vmatpush1.msra.mxu0 0.0
    %367 = vmatprep.subr.mxu0 0.0
    %368 = vmatpush1.msra.mxu0 0.0
    %369 = vmatprep.subr.mxu0 0.0
    %370 = vmatpush1.msra.mxu0 0.0
    %371 = vmatprep.subr.mxu0 0.0
    %372 = vmatpush1.msra.mxu0 0.0
    %373 = vmatprep.subr.mxu0 0.0
    %374 = vmatpush1.msra.mxu0 0.0
    %375 = vmatprep.subr.mxu0 0.0
    %376 = vmatpush1.msra.mxu0 0.0
    %377 = vmatprep.subr.mxu0 0.0
    %378 = vmatpush1.msra.mxu0 0.0
    %379 = vmatprep.subr.mxu0 0.0
    %380 = vmatpush1.msra.mxu0 0.0
    %381 = vmatprep.mubr.f32.mxu0 0.0
    %382 = vmatmul.mubr.f32.gmra.mrb[0].mxu0 %v315
    %v383 = vpop.f32.mrb[0].mxu0
    %v384 = vadd.f32 %v311, %v383
    %v385 = vpop.f32.mrb[0].mxu0
    %386 = vdwg.mxu0
    %vm387 = vcmask 33792
    %v388 = vsel %vm387, %v384, -inf
    %389 = vmax.xlane.f32.xlu0 %v388
    %v390 = vpop.xlane.xlu0 %389
    %v391 = vsub.f32 %v384, %v390
    %v392 = vmul.f32 %v391, 1.442695
    %v393 = vpow.pop %v392
    %v394 = vsel %vm387, %v393, 0.0
    %395 = vadd.xlane.f32.xlu0 %v394
    %v396 = vpop.xlane.xlu0 %395
    %v397 = vlog2.pop %v396
    %v398 = vmul.f32 %v397, 0.6931472
    %v399 = vsub.f32 %v391, %v398
    %400 = vst.msk [vmem:[#allocation5] sm:$0x3] %vm387, %v399
    // Predicated region
    $region26: #{_textcnn_pallas.1} parent=1 // pred_check
      _
    $region27: #{_textcnn_pallas.1} parent=1 // pred_check_branch
      %402 = sbr.rel (0) target = $region29
    $region28: #{_textcnn_pallas.1} parent=1 // pred_region
      %s404 = ssub.s32 32, 32
      %405 = vsyncadd [#allocation4], %s404
      %s407 = sshll.u32 [#allocation5], 4
      %s408 = int_to_ptr.vmem [resolvable:$true] %s407
      %410 = dma.vmem_to_hbm [thread:$0]  %s408, 32, %s5, [#allocation4]
    $region29: #{_textcnn_pallas.1} parent=1 // pred_fallthru
      _
    // Predicated region
    $region30: #{_textcnn_pallas.1} parent=1 // pred_check
      _
    $region31: #{_textcnn_pallas.1} parent=1 // pred_check_branch
      %412 = sbr.rel (0) target = $region33
    $region32: #{_textcnn_pallas.1} parent=1 // pred_region
      %413 = dma.done [#allocation4], 32
    $region33: #{_textcnn_pallas.1} parent=1 // pred_fallthru
      _
    %414 = vsyncpa [#allocation3], 1
    %415 = vsyncpa [#allocation4], 1

</llo_original>
